<compile_context>
chip_gen: v7x
topology: tpu7x:2x2x1
jax: 0.10.0
libtpu: 0.0.40
codegen_flags: <defaults>
</compile_context>

<pallas_src>
import functools

import jax
import jax.numpy as jnp
from jax import lax
from jax.experimental import pallas as pl
from jax.experimental.pallas import tpu as pltpu

_BN_EPS = 1e-5


def _spec(shape):
    # Whole-array single block; grid is () so the index_map takes no args.
    return pl.BlockSpec(shape, lambda: (0,) * len(shape))


# ------------------------------ fused Pallas kernel ------------------------------

def _transform_cov_kernel(x_ref, w1_ref, g1_ref, gamma_ref, beta_ref,
                          w2_ref, g2_ref, o_ref):
    """Fused TransformCov forward:
         y1 = x @ (W1*G1)           (MXU)
         y2 = BatchNorm1d(y1)       (batch stats over the M rows, VPU/EUP)
         o  = y2 @ (W2*G2)          (MXU)
       stored transposed -> (n_route_out, M) so the last dim is lane-dense (M >= 128)."""
    x = x_ref[...]                                                    # (M, n_route)

    # linear1: masked weight built in-kernel (tiny VPU op), then MXU matmul.
    wg1 = w1_ref[...] * g1_ref[...]                                   # (n_route, F1)
    y1 = jnp.dot(x, wg1, preferred_element_type=jnp.float32)          # (M, F1)

    # BatchNorm1d (training-mode forward: biased batch statistics over the M rows).
    mean = jnp.mean(y1, axis=0, keepdims=True)                        # (1, F1)
    centered = y1 - mean
    var = jnp.mean(centered * centered, axis=0, keepdims=True)        # (1, F1)
    inv_std = lax.rsqrt(var + _BN_EPS)                                # EUP slot
    y2 = centered * (inv_std * gamma_ref[...]) + beta_ref[...]        # (M, F1)

    # linear2: masked weight + MXU matmul, then transpose so the store is lane-dense.
    wg2 = w2_ref[...] * g2_ref[...]                                   # (F1, n_route_out)
    o = jnp.dot(y2, wg2, preferred_element_type=jnp.float32)          # (M, n_route_out)
    o_ref[...] = o.T                                                  # (n_route_out, M)


def transform_cov_forward(x, params, Kr, n_route_out):
    """x: (B, c_in, T_slot, n_route) -> (B, c_in, T_slot, n_route_out)."""
    B, C, T, N = x.shape
    M = B * C * T
    F1 = Kr * n_route_out

    x2d = x.reshape(M, N)                       # contiguous reshape, no data movement
    gamma = params['gamma'].reshape(1, F1)
    beta = params['beta'].reshape(1, F1)

    out_t = pl.pallas_call(
        _transform_cov_kernel,
        out_shape=jax.ShapeDtypeStruct((n_route_out, M), jnp.float32),
        in_specs=[_spec((M, N)),
                  _spec((N, F1)), _spec((N, F1)),
                  _spec((1, F1)), _spec((1, F1)),
                  _spec((F1, n_route_out)), _spec((F1, n_route_out))],
        out_specs=_spec((n_route_out, M)),
        compiler_params=pltpu.CompilerParams(vmem_limit_bytes=4 * 1024 * 1024),
    )(x2d, params['W1'], params['G1'], gamma, beta, params['W2'], params['G2'])

    # Layout plumbing only: lane-dense slab -> torch output layout (B, c_in, T_slot, n_route_out).
    return out_t.T.reshape(B, C, T, n_route_out)


# ------------------------------ deterministic parameter init ------------------------------

def init_params(key, n_route, Kr, n_route_out):
    k = jax.random.split(key, 5)
    F1 = Kr * n_route_out
    # gp.Metrix stand-in (external global graph matrix in the torch code).
    metrix = jax.random.normal(k[0], (n_route, n_route_out), jnp.float32) * 0.3
    G1 = jnp.concatenate([metrix] * Kr, axis=1)                              # (n_route, F1)
    G2 = jnp.concatenate([jnp.eye(n_route_out, dtype=jnp.float32)] * Kr, 0)  # (F1, n_route_out)
    # torch inits W to ones and (gamma, beta) to (1, 0); perturbed values are used here so the
    # numerical check is non-trivial -- forward semantics are identical for any parameter values.
    return {
        'G1': G1,
        'W1': 1.0 + 0.5 * jax.random.normal(k[1], (n_route, F1), jnp.float32),
        'G2': G2,
        'W2': 1.0 + 0.5 * jax.random.normal(k[2], (F1, n_route_out), jnp.float32),
        'gamma': 1.0 + 0.2 * jax.random.normal(k[3], (F1,), jnp.float32),
        'beta': 0.1 * jax.random.normal(k[4], (F1,), jnp.float32),
    }


# ------------------------------ plain-JAX reference (verification) ------------------------------

def reference_forward(x, params, Kr, n_route_out):
    B, C, T, N = x.shape
    x2d = x.reshape(-1, N)
    y1 = x2d @ (params['W1'] * params['G1'])
    mean = jnp.mean(y1, axis=0)
    var = jnp.mean((y1 - mean) ** 2, axis=0)
    y2 = (y1 - mean) / jnp.sqrt(var + _BN_EPS) * params['gamma'] + params['beta']
    y3 = y2 @ (params['W2'] * params['G2'])
    return y3.reshape(B, C, T, n_route_out)


# ------------------------------ main ------------------------------

if __name__ == "__main__":
    key = jax.random.PRNGKey(0)
    kx, kp = jax.random.split(key)

    # x_shape = (batch, c_in, T_slot, n_route); M = B*C*T = 128 rows -> lane-dense output slab.
    B, C, T, N = 2, 4, 16, 16
    Kr, n_route_out = 2, 16

    x = jax.random.normal(kx, (B, C, T, N), jnp.float32)
    params = init_params(kp, N, Kr, n_route_out)

    fwd = jax.jit(functools.partial(transform_cov_forward, Kr=Kr, n_route_out=n_route_out))
    out = fwd(x, params)
    jax.block_until_ready(out)

    ref = reference_forward(x, params, Kr, n_route_out)
    assert out.shape == (B, C, T, n_route_out), out.shape
    assert jnp.allclose(out, ref, atol=1e-4, rtol=1e-4), float(jnp.max(jnp.abs(out - ref)))
    print("KERNEL_OK")
</pallas_src>

<mosaic_0001>
module attributes {stable_mosaic.version = 11 : i64} {
  func.func @_transform_cov_kernel(%arg0: memref<128x16xf32, #tpu.memory_space<vmem>>, %arg1: memref<16x32xf32, #tpu.memory_space<vmem>>, %arg2: memref<16x32xf32, #tpu.memory_space<vmem>>, %arg3: memref<1x32xf32, #tpu.memory_space<vmem>>, %arg4: memref<1x32xf32, #tpu.memory_space<vmem>>, %arg5: memref<32x16xf32, #tpu.memory_space<vmem>>, %arg6: memref<32x16xf32, #tpu.memory_space<vmem>>, %arg7: memref<16x128xf32, #tpu.memory_space<vmem>>) attributes {dimension_semantics = [], scalar_prefetch = 0 : i64, scratch_operands = 0 : i64, tpu.core_type = #tpu.core_type<tc>} {
    %c0 = arith.constant 0 : index
    %c0_0 = arith.constant 0 : index
    %0 = vector.load %arg0[%c0, %c0_0] : memref<128x16xf32, #tpu.memory_space<vmem>>, vector<128x16xf32>
    %c0_1 = arith.constant 0 : index
    %c0_2 = arith.constant 0 : index
    %1 = vector.load %arg1[%c0_1, %c0_2] : memref<16x32xf32, #tpu.memory_space<vmem>>, vector<16x32xf32>
    %c0_3 = arith.constant 0 : index
    %c0_4 = arith.constant 0 : index
    %2 = vector.load %arg2[%c0_3, %c0_4] : memref<16x32xf32, #tpu.memory_space<vmem>>, vector<16x32xf32>
    %3 = arith.mulf %1, %2 : vector<16x32xf32>
    %cst = arith.constant dense<0.000000e+00> : vector<128x32xf32>
    %4 = tpu.matmul %0, %3, %cst {dimension_numbers = #tpu.dot_dimension_numbers<[1], [0], [0], [1], [0, 0, 1, 1], [], []>} : vector<128x16xf32>, vector<16x32xf32>, vector<128x32xf32> -> vector<128x32xf32>
    %cst_5 = arith.constant dense<0.000000e+00> : vector<32xf32>
    %5 = vector.multi_reduction <add>, %4, %cst_5 [0] : vector<128x32xf32> to vector<32xf32>
    %6 = vector.shape_cast %5 : vector<32xf32> to vector<1x32xf32>
    %cst_6 = arith.constant 1.280000e+02 : f32
    %7 = vector.broadcast %cst_6 : f32 to vector<1x32xf32>
    %8 = arith.divf %6, %7 : vector<1x32xf32>
    %9 = vector.broadcast %8 : vector<1x32xf32> to vector<128x32xf32>
    %10 = arith.subf %4, %9 : vector<128x32xf32>
    %11 = arith.mulf %10, %10 : vector<128x32xf32>
    %cst_7 = arith.constant dense<0.000000e+00> : vector<32xf32>
    %12 = vector.multi_reduction <add>, %11, %cst_7 [0] : vector<128x32xf32> to vector<32xf32>
    %13 = vector.shape_cast %12 : vector<32xf32> to vector<1x32xf32>
    %cst_8 = arith.constant 1.280000e+02 : f32
    %14 = vector.broadcast %cst_8 : f32 to vector<1x32xf32>
    %15 = arith.divf %13, %14 : vector<1x32xf32>
    %cst_9 = arith.constant 9.99999974E-6 : f32
    %16 = vector.broadcast %cst_9 : f32 to vector<1x32xf32>
    %17 = arith.addf %15, %16 : vector<1x32xf32>
    %18 = math.rsqrt %17 : vector<1x32xf32>
    %c0_10 = arith.constant 0 : index
    %c0_11 = arith.constant 0 : index
    %19 = vector.load %arg3[%c0_10, %c0_11] : memref<1x32xf32, #tpu.memory_space<vmem>>, vector<1x32xf32>
    %20 = arith.mulf %18, %19 : vector<1x32xf32>
    %21 = vector.broadcast %20 : vector<1x32xf32> to vector<128x32xf32>
    %22 = arith.mulf %10, %21 : vector<128x32xf32>
    %c0_12 = arith.constant 0 : index
    %c0_13 = arith.constant 0 : index
    %23 = vector.load %arg4[%c0_12, %c0_13] : memref<1x32xf32, #tpu.memory_space<vmem>>, vector<1x32xf32>
    %24 = vector.broadcast %23 : vector<1x32xf32> to vector<128x32xf32>
    %25 = arith.addf %22, %24 : vector<128x32xf32>
    %c0_14 = arith.constant 0 : index
    %c0_15 = arith.constant 0 : index
    %26 = vector.load %arg5[%c0_14, %c0_15] : memref<32x16xf32, #tpu.memory_space<vmem>>, vector<32x16xf32>
    %c0_16 = arith.constant 0 : index
    %c0_17 = arith.constant 0 : index
    %27 = vector.load %arg6[%c0_16, %c0_17] : memref<32x16xf32, #tpu.memory_space<vmem>>, vector<32x16xf32>
    %28 = arith.mulf %26, %27 : vector<32x16xf32>
    %cst_18 = arith.constant dense<0.000000e+00> : vector<128x16xf32>
    %29 = tpu.matmul %25, %28, %cst_18 {dimension_numbers = #tpu.dot_dimension_numbers<[1], [0], [0], [1], [0, 0, 1, 1], [], []>} : vector<128x32xf32>, vector<32x16xf32>, vector<128x16xf32> -> vector<128x16xf32>
    %30 = tpu.transpose %29, [1, 0] : vector<128x16xf32> -> vector<16x128xf32>
    %c0_19 = arith.constant 0 : index
    %c0_20 = arith.constant 0 : index
    %31 = vector.load %arg7[%c0_19, %c0_20] : memref<16x128xf32, #tpu.memory_space<vmem>>, vector<16x128xf32>
    tpu.vector_store %arg7[%c0_19, %c0_20], %30 {strides = array<i32>} : memref<16x128xf32, #tpu.memory_space<vmem>>, vector<16x128xf32>,
    return
  }
}

</mosaic_0001>

<llo_original>
// kernel: transform_cov_forward.1
$region0: #{transform_cov_forward.1}
  #allocation0 [shape = 'u32[]', space=smem, size = 0x4, offset = 0x4, fixed_abs, tag = 'smem constant byte address 0x4 - core index']
  #allocation1 [shape = 'u32[144,128]{1,0:T(1,128)}', space=vmem, size = 0x12000, scoped, tag = 'internal scratch']
  %s0 = inlined_call_operand.hbm [shape: f32[128,16], index: 0, kind: input, shape index: {}]
  %s1 = inlined_call_operand.vmem [shape: f32[16,32], index: 1, kind: input, shape index: {}]
  %s2 = inlined_call_operand.vmem [shape: f32[16,32], index: 2, kind: input, shape index: {}]
  %s3 = inlined_call_operand.vmem [shape: f32[1,32], index: 3, kind: input, shape index: {}]
  %s4 = inlined_call_operand.vmem [shape: f32[1,32], index: 4, kind: input, shape index: {}]
  %s5 = inlined_call_operand.vmem [shape: f32[32,16], index: 5, kind: input, shape index: {}]
  %s6 = inlined_call_operand.vmem [shape: f32[32,16], index: 6, kind: input, shape index: {}]
  %s7 = inlined_call_operand.vmem [shape: f32[16,128], index: 7, kind: output, shape index: {}]
  %s8 = sld [smem:[#allocation0]]
  $region42: #{transform_cov_forward.1} parent=0
    _
  %s10 = ssub.s32 1, %s8
  %s11 = scalar_select 0, %s10, %s8
  $region1: #{transform_cov_forward.1} parent=0
    #allocation2 [shape = 'u8[65536]{0}', space=vmem, size = 0x10000, scoped, tag = 'input window, operand 0, single buffered']
    #allocation3 [shape = 's32[1]{0}', space=sflag, size = 0x4, scoped, tag = 'scoped memory for transform_cov_forward.1']
    %12 = vsyncpa [#allocation3], 0
    // Predicated region
    $region2: #{transform_cov_forward.1} parent=1 // pred_check
      _
    $region3: #{transform_cov_forward.1} parent=1 // pred_check_branch
      %14 = sbr.rel (0) target = $region5
    $region4: #{transform_cov_forward.1} parent=1 // pred_region
      %s16 = ssub.s32 2048, 2048
      %17 = vsyncadd [#allocation3], %s16
      %s18 = sshll.u32 [#allocation2], 4
      %s19 = int_to_ptr.vmem [resolvable:$true] %s18
      %24 = dma.hbm_to_vmem [thread:$0]  %s0, 2048, %s19, [#allocation3], 128, 128, 8
    $region5: #{transform_cov_forward.1} parent=1 // pred_fallthru
      _
    // Predicated region
    $region6: #{transform_cov_forward.1} parent=1 // pred_check
      _
    $region7: #{transform_cov_forward.1} parent=1 // pred_check_branch
      %26 = sbr.rel (0) target = $region9
    $region8: #{transform_cov_forward.1} parent=1 // pred_region
      _
    $region9: #{transform_cov_forward.1} parent=1 // pred_fallthru
      _
    // Predicated region
    $region10: #{transform_cov_forward.1} parent=1 // pred_check
      _
    $region11: #{transform_cov_forward.1} parent=1 // pred_check_branch
      %28 = sbr.rel (0) target = $region13
    $region12: #{transform_cov_forward.1} parent=1 // pred_region
      _
    $region13: #{transform_cov_forward.1} parent=1 // pred_fallthru
      _
    // Predicated region
    $region14: #{transform_cov_forward.1} parent=1 // pred_check
      _
    $region15: #{transform_cov_forward.1} parent=1 // pred_check_branch
      %30 = sbr.rel (0) target = $region17
    $region16: #{transform_cov_forward.1} parent=1 // pred_region
      _
    $region17: #{transform_cov_forward.1} parent=1 // pred_fallthru
      _
    // Predicated region
    $region18: #{transform_cov_forward.1} parent=1 // pred_check
      _
    $region19: #{transform_cov_forward.1} parent=1 // pred_check_branch
      %32 = sbr.rel (0) target = $region21
    $region20: #{transform_cov_forward.1} parent=1 // pred_region
      _
    $region21: #{transform_cov_forward.1} parent=1 // pred_fallthru
      _
    // Predicated region
    $region22: #{transform_cov_forward.1} parent=1 // pred_check
      _
    $region23: #{transform_cov_forward.1} parent=1 // pred_check_branch
      %34 = sbr.rel (0) target = $region25
    $region24: #{transform_cov_forward.1} parent=1 // pred_region
      _
    $region25: #{transform_cov_forward.1} parent=1 // pred_fallthru
      _
    // Predicated region
    $region26: #{transform_cov_forward.1} parent=1 // pred_check
      _
    $region27: #{transform_cov_forward.1} parent=1 // pred_check_branch
      %36 = sbr.rel (0) target = $region29
    $region28: #{transform_cov_forward.1} parent=1 // pred_region
      _
    $region29: #{transform_cov_forward.1} parent=1 // pred_fallthru
      _
    // Predicated region
    $region30: #{transform_cov_forward.1} parent=1 // pred_check
      _
    $region31: #{transform_cov_forward.1} parent=1 // pred_check_branch
      %38 = sbr.rel (0) target = $region33
    $region32: #{transform_cov_forward.1} parent=1 // pred_region
      %39 = dma.done [#allocation3], 2048
    $region33: #{transform_cov_forward.1} parent=1 // pred_fallthru
      _
    %v40 = vld [vmem:[#allocation2] sm:$0xff]
    %v41 = vld [vmem:[#allocation2 + $0x8] sm:$0xff]
    %v42 = vld [vmem:[#allocation2 + $0x10] sm:$0xff]
    %v43 = vld [vmem:[#allocation2 + $0x18] sm:$0xff]
    %v44 = vld [vmem:[#allocation2 + $0x20] sm:$0xff]
    %v45 = vld [vmem:[#allocation2 + $0x28] sm:$0xff]
    %v46 = vld [vmem:[#allocation2 + $0x30] sm:$0xff]
    %v47 = vld [vmem:[#allocation2 + $0x38] sm:$0xff]
    %v48 = vld [vmem:[#allocation2 + $0x40] sm:$0xff]
    %v49 = vld [vmem:[#allocation2 + $0x48] sm:$0xff]
    %v50 = vld [vmem:[#allocation2 + $0x50] sm:$0xff]
    %v51 = vld [vmem:[#allocation2 + $0x58] sm:$0xff]
    %v52 = vld [vmem:[#allocation2 + $0x60] sm:$0xff]
    %v53 = vld [vmem:[#allocation2 + $0x68] sm:$0xff]
    %v54 = vld [vmem:[#allocation2 + $0x70] sm:$0xff]
    %v55 = vld [vmem:[#allocation2 + $0x78] sm:$0xff]
    %v56 = vld [vmem:[%s1] sm:$0xff]
    %v57 = vld [vmem:[%s1 + $0x8] sm:$0xff]
    %v58 = vld [vmem:[%s2] sm:$0xff]
    %v59 = vld [vmem:[%s2 + $0x8] sm:$0xff]
    %v60 = vmul.f32 %v56, %v58
    %v61 = vmul.f32 %v57, %v59
    %vm62 = vcmask 130048
    %v64 = vsel %vm62, %v40, 0
    %v67 = vsel %vm62, %v41, 0
    %v70 = vsel %vm62, %v42, 0
    %v73 = vsel %vm62, %v43, 0
    %v76 = vsel %vm62, %v44, 0
    %v79 = vsel %vm62, %v45, 0
    %v82 = vsel %vm62, %v46, 0
    %v85 = vsel %vm62, %v47, 0
    %v88 = vsel %vm62, %v48, 0
    %v91 = vsel %vm62, %v49, 0
    %v94 = vsel %vm62, %v50, 0
    %v97 = vsel %vm62, %v51, 0
    %v100 = vsel %vm62, %v52, 0
    %v103 = vsel %vm62, %v53, 0
    %v106 = vsel %vm62, %v54, 0
    %v109 = vsel %vm62, %v55, 0
    %111 = vmatprep.subr.mxu0 0.0
    %112 = vmatpush1.msra.mxu0 %v60
    %113 = vmatprep.subr.mxu0 0.0
    %114 = vmatpush1.msra.mxu0 %v61
    %115 = vmatprep.subr.mxu0 0.0
    %116 = vmatpush1.msra.mxu0 0.0
    %117 = vmatprep.subr.mxu0 0.0
    %118 = vmatpush1.msra.mxu0 0.0
    %119 = vmatprep.subr.mxu0 0.0
    %120 = vmatpush1.msra.mxu0 0.0
    %121 = vmatprep.subr.mxu0 0.0
    %122 = vmatpush1.msra.mxu0 0.0
    %123 = vmatprep.subr.mxu0 0.0
    %124 = vmatpush1.msra.mxu0 0.0
    %125 = vmatprep.subr.mxu0 0.0
    %126 = vmatpush1.msra.mxu0 0.0
    %127 = vmatprep.subr.mxu0 0.0
    %128 = vmatpush1.msra.mxu0 0.0
    %129 = vmatprep.subr.mxu0 0.0
    %130 = vmatpush1.msra.mxu0 0.0
    %131 = vmatprep.subr.mxu0 0.0
    %132 = vmatpush1.msra.mxu0 0.0
    %133 = vmatprep.subr.mxu0 0.0
    %134 = vmatpush1.msra.mxu0 0.0
    %135 = vmatprep.subr.mxu0 0.0
    %136 = vmatpush1.msra.mxu0 0.0
    %137 = vmatprep.subr.mxu0 0.0
    %138 = vmatpush1.msra.mxu0 0.0
    %139 = vmatprep.subr.mxu0 0.0
    %140 = vmatpush1.msra.mxu0 0.0
    %141 = vmatprep.subr.mxu0 0.0
    %142 = vmatpush1.msra.mxu0 0.0
    %143 = vmatprep.subr.mxu0 0.0
    %144 = vmatpush1.msra.mxu0 0.0
    %145 = vmatprep.subr.mxu0 0.0
    %146 = vmatpush1.msra.mxu0 0.0
    %147 = vmatprep.subr.mxu0 0.0
    %148 = vmatpush1.msra.mxu0 0.0
    %149 = vmatprep.subr.mxu0 0.0
    %150 = vmatpush1.msra.mxu0 0.0
    %151 = vmatprep.subr.mxu0 0.0
    %152 = vmatpush1.msra.mxu0 0.0
    %153 = vmatprep.subr.mxu0 0.0
    %154 = vmatpush1.msra.mxu0 0.0
    %155 = vmatprep.subr.mxu0 0.0
    %156 = vmatpush1.msra.mxu0 0.0
    %157 = vmatprep.subr.mxu0 0.0
    %158 = vmatpush1.msra.mxu0 0.0
    %159 = vmatprep.subr.mxu0 0.0
    %160 = vmatpush1.msra.mxu0 0.0
    %161 = vmatprep.subr.mxu0 0.0
    %162 = vmatpush1.msra.mxu0 0.0
    %163 = vmatprep.subr.mxu0 0.0
    %164 = vmatpush1.msra.mxu0 0.0
    %165 = vmatprep.subr.mxu0 0.0
    %166 = vmatpush1.msra.mxu0 0.0
    %167 = vmatprep.subr.mxu0 0.0
    %168 = vmatpush1.msra.mxu0 0.0
    %169 = vmatprep.subr.mxu0 0.0
    %170 = vmatpush1.msra.mxu0 0.0
    %171 = vmatprep.subr.mxu0 0.0
    %172 = vmatpush1.msra.mxu0 0.0
    %173 = vmatprep.subr.mxu0 0.0
    %174 = vmatpush1.msra.mxu0 0.0
    %175 = vmatprep.mubr.f32.mxu0 0.0
    %176 = vmatmul.mubr.f32.gmra.mrb[0].mxu0 %v64
    %v177 = vpop.f32.mrb[0].mxu0
    %v178 = vadd.f32 0.0, %v177
    %v179 = vpop.f32.mrb[0].mxu0
    %180 = vmatprep.mubr.f32.mxu0 0.0
    %181 = vmatmul.mubr.f32.gmra.mrb[0].mxu0 %v67
    %v182 = vpop.f32.mrb[0].mxu0
    %v183 = vadd.f32 0.0, %v182
    %v184 = vpop.f32.mrb[0].mxu0
    %185 = vmatprep.mubr.f32.mxu0 0.0
    %186 = vmatmul.mubr.f32.gmra.mrb[0].mxu0 %v70
    %v187 = vpop.f32.mrb[0].mxu0
    %v188 = vadd.f32 0.0, %v187
    %v189 = vpop.f32.mrb[0].mxu0
    %190 = vmatprep.mubr.f32.mxu0 0.0
    %191 = vmatmul.mubr.f32.gmra.mrb[0].mxu0 %v73
    %v192 = vpop.f32.mrb[0].mxu0
    %v193 = vadd.f32 0.0, %v192
    %v194 = vpop.f32.mrb[0].mxu0
    %195 = vmatprep.mubr.f32.mxu0 0.0
    %196 = vmatmul.mubr.f32.gmra.mrb[0].mxu0 %v76
    %v197 = vpop.f32.mrb[0].mxu0
    %v198 = vadd.f32 0.0, %v197
    %v199 = vpop.f32.mrb[0].mxu0
    %200 = vmatprep.mubr.f32.mxu0 0.0
    %201 = vmatmul.mubr.f32.gmra.mrb[0].mxu0 %v79
    %v202 = vpop.f32.mrb[0].mxu0
    %v203 = vadd.f32 0.0, %v202
    %v204 = vpop.f32.mrb[0].mxu0
    %205 = vmatprep.mubr.f32.mxu0 0.0
    %206 = vmatmul.mubr.f32.gmra.mrb[0].mxu0 %v82
    %v207 = vpop.f32.mrb[0].mxu0
    %v208 = vadd.f32 0.0, %v207
    %v209 = vpop.f32.mrb[0].mxu0
    %210 = vmatprep.mubr.f32.mxu0 0.0
    %211 = vmatmul.mubr.f32.gmra.mrb[0].mxu0 %v85
    %v212 = vpop.f32.mrb[0].mxu0
    %v213 = vadd.f32 0.0, %v212
    %v214 = vpop.f32.mrb[0].mxu0
    %215 = vmatprep.mubr.f32.mxu0 0.0
    %216 = vmatmul.mubr.f32.gmra.mrb[0].mxu0 %v88
    %v217 = vpop.f32.mrb[0].mxu0
    %v218 = vadd.f32 0.0, %v217
    %v219 = vpop.f32.mrb[0].mxu0
    %220 = vmatprep.mubr.f32.mxu0 0.0
    %221 = vmatmul.mubr.f32.gmra.mrb[0].mxu0 %v91
    %v222 = vpop.f32.mrb[0].mxu0
    %v223 = vadd.f32 0.0, %v222
    %v224 = vpop.f32.mrb[0].mxu0
    %225 = vmatprep.mubr.f32.mxu0 0.0
    %226 = vmatmul.mubr.f32.gmra.mrb[0].mxu0 %v94
    %v227 = vpop.f32.mrb[0].mxu0
    %v228 = vadd.f32 0.0, %v227
    %v229 = vpop.f32.mrb[0].mxu0
    %230 = vmatprep.mubr.f32.mxu0 0.0
    %231 = vmatmul.mubr.f32.gmra.mrb[0].mxu0 %v97
    %v232 = vpop.f32.mrb[0].mxu0
    %v233 = vadd.f32 0.0, %v232
    %v234 = vpop.f32.mrb[0].mxu0
    %235 = vmatprep.mubr.f32.mxu0 0.0
    %236 = vmatmul.mubr.f32.gmra.mrb[0].mxu0 %v100
    %v237 = vpop.f32.mrb[0].mxu0
    %v238 = vadd.f32 0.0, %v237
    %v239 = vpop.f32.mrb[0].mxu0
    %240 = vmatprep.mubr.f32.mxu0 0.0
    %241 = vmatmul.mubr.f32.gmra.mrb[0].mxu0 %v103
    %v242 = vpop.f32.mrb[0].mxu0
    %v243 = vadd.f32 0.0, %v242
    %v244 = vpop.f32.mrb[0].mxu0
    %245 = vmatprep.mubr.f32.mxu0 0.0
    %246 = vmatmul.mubr.f32.gmra.mrb[0].mxu0 %v106
    %v247 = vpop.f32.mrb[0].mxu0
    %v248 = vadd.f32 0.0, %v247
    %v249 = vpop.f32.mrb[0].mxu0
    %250 = vmatprep.mubr.f32.mxu0 0.0
    %251 = vmatmul.mubr.f32.gmra.mrb[0].mxu0 %v109
    %v252 = vpop.f32.mrb[0].mxu0
    %v253 = vadd.f32 0.0, %v252
    %v254 = vpop.f32.mrb[0].mxu0
    %255 = vdwg.mxu0
    %vm256 = vcmask 261120
    %v257 = vsel %vm256, %v178, 0.0
    %v258 = vsel %vm256, %v183, 0.0
    %v259 = vadd.f32 %v257, %v258
    %v260 = vsel %vm256, %v188, 0.0
    %v261 = vadd.f32 %v259, %v260
    %v262 = vsel %vm256, %v193, 0.0
    %v263 = vadd.f32 %v261, %v262
    %v264 = vsel %vm256, %v198, 0.0
    %v265 = vadd.f32 %v263, %v264
    %v266 = vsel %vm256, %v203, 0.0
    %v267 = vadd.f32 %v265, %v266
    %v268 = vsel %vm256, %v208, 0.0
    %v269 = vadd.f32 %v267, %v268
    %v270 = vsel %vm256, %v213, 0.0
    %v271 = vadd.f32 %v269, %v270
    %v272 = vsel %vm256, %v218, 0.0
    %v273 = vadd.f32 %v271, %v272
    %v274 = vsel %vm256, %v223, 0.0
    %v275 = vadd.f32 %v273, %v274
    %v276 = vsel %vm256, %v228, 0.0
    %v277 = vadd.f32 %v275, %v276
    %v278 = vsel %vm256, %v233, 0.0
    %v279 = vadd.f32 %v277, %v278
    %v280 = vsel %vm256, %v238, 0.0
    %v281 = vadd.f32 %v279, %v280
    %v282 = vsel %vm256, %v243, 0.0
    %v283 = vadd.f32 %v281, %v282
    %v284 = vsel %vm256, %v248, 0.0
    %v285 = vadd.f32 %v283, %v284
    %v286 = vsel %vm256, %v253, 0.0
    %v287 = vadd.f32 %v285, %v286
    %v288 = vrot.slane %v287, 4
    %v289 = vadd.f32 %v287, %v288
    %v290 = vrot.slane %v289, 2
    %v291 = vadd.f32 %v289, %v290
    %v292 = vrot.slane %v291, 1
    %v293 = vadd.f32 %v291, %v292
    %v294 = vrcp.pop 128.0
    %v295 = vmul.f32 %v293, %v294
    %v296 = vsub.f32 %v178, %v295
    %v297 = vsub.f32 %v183, %v295
    %v298 = vsub.f32 %v188, %v295
    %v299 = vsub.f32 %v193, %v295
    %v300 = vsub.f32 %v198, %v295
    %v301 = vsub.f32 %v203, %v295
    %v302 = vsub.f32 %v208, %v295
    %v303 = vsub.f32 %v213, %v295
    %v304 = vsub.f32 %v218, %v295
    %v305 = vsub.f32 %v223, %v295
    %v306 = vsub.f32 %v228, %v295
    %v307 = vsub.f32 %v233, %v295
    %v308 = vsub.f32 %v238, %v295
    %v309 = vsub.f32 %v243, %v295
    %v310 = vsub.f32 %v248, %v295
    %v311 = vsub.f32 %v253, %v295
    %v312 = vmul.f32 %v296, %v296
    %v313 = vmul.f32 %v297, %v297
    %v314 = vmul.f32 %v298, %v298
    %v315 = vmul.f32 %v299, %v299
    %v316 = vmul.f32 %v300, %v300
    %v317 = vmul.f32 %v301, %v301
    %v318 = vmul.f32 %v302, %v302
    %v319 = vmul.f32 %v303, %v303
    %v320 = vmul.f32 %v304, %v304
    %v321 = vmul.f32 %v305, %v305
    %v322 = vmul.f32 %v306, %v306
    %v323 = vmul.f32 %v307, %v307
    %v324 = vmul.f32 %v308, %v308
    %v325 = vmul.f32 %v309, %v309
    %v326 = vmul.f32 %v310, %v310
    %v327 = vmul.f32 %v311, %v311
    %v328 = vsel %vm256, %v312, 0.0
    %v329 = vsel %vm256, %v313, 0.0
    %v330 = vadd.f32 %v328, %v329
    %v331 = vsel %vm256, %v314, 0.0
    %v332 = vadd.f32 %v330, %v331
    %v333 = vsel %vm256, %v315, 0.0
    %v334 = vadd.f32 %v332, %v333
    %v335 = vsel %vm256, %v316, 0.0
    %v336 = vadd.f32 %v334, %v335
    %v337 = vsel %vm256, %v317, 0.0
    %v338 = vadd.f32 %v336, %v337
    %v339 = vsel %vm256, %v318, 0.0
    %v340 = vadd.f32 %v338, %v339
    %v341 = vsel %vm256, %v319, 0.0
    %v342 = vadd.f32 %v340, %v341
    %v343 = vsel %vm256, %v320, 0.0
    %v344 = vadd.f32 %v342, %v343
    %v345 = vsel %vm256, %v321, 0.0
    %v346 = vadd.f32 %v344, %v345
    %v347 = vsel %vm256, %v322, 0.0
    %v348 = vadd.f32 %v346, %v347
    %v349 = vsel %vm256, %v323, 0.0
    %v350 = vadd.f32 %v348, %v349
    %v351 = vsel %vm256, %v324, 0.0
    %v352 = vadd.f32 %v350, %v351
    %v353 = vsel %vm256, %v325, 0.0
    %v354 = vadd.f32 %v352, %v353
    %v355 = vsel %vm256, %v326, 0.0
    %v356 = vadd.f32 %v354, %v355
    %v357 = vsel %vm256, %v327, 0.0
    %v358 = vadd.f32 %v356, %v357
    %v359 = vrot.slane %v358, 4
    %v360 = vadd.f32 %v358, %v359
    %v361 = vrot.slane %v360, 2
    %v362 = vadd.f32 %v360, %v361
    %v363 = vrot.slane %v362, 1
    %v364 = vadd.f32 %v362, %v363
    %v365 = vmul.f32 %v364, %v294
    %v366 = vadd.f32 %v365, 1e-05
    %v367 = vrsqrt.pop %v366
    %v368 = vld [vmem:[%s3] sm:$0x1]
    %v369 = vmul.f32 %v367, %v368
    %v370 = vlaneseq
    %v371 = vshrl.u32 %v370, 7
    %v372 = vsub.s32 0, %v371
    %v373 = vrot.slane %v369, %v372
    %v374 = vmul.f32 %v296, %v373
    %v375 = vmul.f32 %v297, %v373
    %v376 = vmul.f32 %v298, %v373
    %v377 = vmul.f32 %v299, %v373
    %v378 = vmul.f32 %v300, %v373
    %v379 = vmul.f32 %v301, %v373
    %v380 = vmul.f32 %v302, %v373
    %v381 = vmul.f32 %v303, %v373
    %v382 = vmul.f32 %v304, %v373
    %v383 = vmul.f32 %v305, %v373
    %v384 = vmul.f32 %v306, %v373
    %v385 = vmul.f32 %v307, %v373
    %v386 = vmul.f32 %v308, %v373
    %v387 = vmul.f32 %v309, %v373
    %v388 = vmul.f32 %v310, %v373
    %v389 = vmul.f32 %v311, %v373
    %v390 = vld [vmem:[%s4] sm:$0x1]
    %v392 = vlaneseq
    %v393 = vshrl.u32 %v392, 7
    %v394 = vsub.s32 0, %v393
    %v395 = vrot.slane %v390, %v394
    %v397 = vadd.f32 %v374, %v395
    %v398 = vadd.f32 %v375, %v395
    %v399 = vadd.f32 %v376, %v395
    %v400 = vadd.f32 %v377, %v395
    %v401 = vadd.f32 %v378, %v395
    %v402 = vadd.f32 %v379, %v395
    %v403 = vadd.f32 %v380, %v395
    %v404 = vadd.f32 %v381, %v395
    %v405 = vadd.f32 %v382, %v395
    %v406 = vadd.f32 %v383, %v395
    %v407 = vadd.f32 %v384, %v395
    %v408 = vadd.f32 %v385, %v395
    %v409 = vadd.f32 %v386, %v395
    %v410 = vadd.f32 %v387, %v395
    %v411 = vadd.f32 %v388, %v395
    %v412 = vadd.f32 %v389, %v395
    %v413 = vld [vmem:[%s5] sm:$0xff]
    %v414 = vld [vmem:[%s5 + $0x8] sm:$0xff]
    %v415 = vld [vmem:[%s5 + $0x10] sm:$0xff]
    %v416 = vld [vmem:[%s5 + $0x18] sm:$0xff]
    %v417 = vld [vmem:[%s6] sm:$0xff]
    %v418 = vld [vmem:[%s6 + $0x8] sm:$0xff]
    %v419 = vld [vmem:[%s6 + $0x10] sm:$0xff]
    %v420 = vld [vmem:[%s6 + $0x18] sm:$0xff]
    %v421 = vmul.f32 %v413, %v417
    %v422 = vmul.f32 %v414, %v418
    %v423 = vmul.f32 %v415, %v419
    %v424 = vmul.f32 %v416, %v420
    %v426 = vsel %vm256, %v397, 0
    %v429 = vsel %vm256, %v398, 0
    %v432 = vsel %vm256, %v399, 0
    %v435 = vsel %vm256, %v400, 0
    %v438 = vsel %vm256, %v401, 0
    %v441 = vsel %vm256, %v402, 0
    %v444 = vsel %vm256, %v403, 0
    %v447 = vsel %vm256, %v404, 0
    %v450 = vsel %vm256, %v405, 0
    %v453 = vsel %vm256, %v406, 0
    %v456 = vsel %vm256, %v407, 0
    %v459 = vsel %vm256, %v408, 0
    %v462 = vsel %vm256, %v409, 0
    %v465 = vsel %vm256, %v410, 0
    %v468 = vsel %vm256, %v411, 0
    %v471 = vsel %vm256, %v412, 0
    %473 = vmatprep.subr.mxu0 0.0
    %474 = vmatpush1.msra.mxu0 %v421
    %475 = vmatprep.subr.mxu0 0.0
    %476 = vmatpush1.msra.mxu0 %v422
    %477 = vmatprep.subr.mxu0 0.0
    %478 = vmatpush1.msra.mxu0 %v423
    %479 = vmatprep.subr.mxu0 0.0
    %480 = vmatpush1.msra.mxu0 %v424
    %481 = vmatprep.subr.mxu0 0.0
    %482 = vmatpush1.msra.mxu0 0.0
    %483 = vmatprep.subr.mxu0 0.0
    %484 = vmatpush1.msra.mxu0 0.0
    %485 = vmatprep.subr.mxu0 0.0
    %486 = vmatpush1.msra.mxu0 0.0
    %487 = vmatprep.subr.mxu0 0.0
    %488 = vmatpush1.msra.mxu0 0.0
    %489 = vmatprep.subr.mxu0 0.0
    %490 = vmatpush1.msra.mxu0 0.0
    %491 = vmatprep.subr.mxu0 0.0
    %492 = vmatpush1.msra.mxu0 0.0
    %493 = vmatprep.subr.mxu0 0.0
    %494 = vmatpush1.msra.mxu0 0.0
    %495 = vmatprep.subr.mxu0 0.0
    %496 = vmatpush1.msra.mxu0 0.0
    %497 = vmatprep.subr.mxu0 0.0
    %498 = vmatpush1.msra.mxu0 0.0
    %499 = vmatprep.subr.mxu0 0.0
    %500 = vmatpush1.msra.mxu0 0.0
    %501 = vmatprep.subr.mxu0 0.0
    %502 = vmatpush1.msra.mxu0 0.0
    %503 = vmatprep.subr.mxu0 0.0
    %504 = vmatpush1.msra.mxu0 0.0
    %505 = vmatprep.subr.mxu0 0.0
    %506 = vmatpush1.msra.mxu0 0.0
    %507 = vmatprep.subr.mxu0 0.0
    %508 = vmatpush1.msra.mxu0 0.0
    %509 = vmatprep.subr.mxu0 0.0
    %510 = vmatpush1.msra.mxu0 0.0
    %511 = vmatprep.subr.mxu0 0.0
    %512 = vmatpush1.msra.mxu0 0.0
    %513 = vmatprep.subr.mxu0 0.0
    %514 = vmatpush1.msra.mxu0 0.0
    %515 = vmatprep.subr.mxu0 0.0
    %516 = vmatpush1.msra.mxu0 0.0
    %517 = vmatprep.subr.mxu0 0.0
    %518 = vmatpush1.msra.mxu0 0.0
    %519 = vmatprep.subr.mxu0 0.0
    %520 = vmatpush1.msra.mxu0 0.0
    %521 = vmatprep.subr.mxu0 0.0
    %522 = vmatpush1.msra.mxu0 0.0
    %523 = vmatprep.subr.mxu0 0.0
    %524 = vmatpush1.msra.mxu0 0.0
    %525 = vmatprep.subr.mxu0 0.0
    %526 = vmatpush1.msra.mxu0 0.0
    %527 = vmatprep.subr.mxu0 0.0
    %528 = vmatpush1.msra.mxu0 0.0
    %529 = vmatprep.subr.mxu0 0.0
    %530 = vmatpush1.msra.mxu0 0.0
    %531 = vmatprep.subr.mxu0 0.0
    %532 = vmatpush1.msra.mxu0 0.0
    %533 = vmatprep.subr.mxu0 0.0
    %534 = vmatpush1.msra.mxu0 0.0
    %535 = vmatprep.subr.mxu0 0.0
    %536 = vmatpush1.msra.mxu0 0.0
    %537 = vmatprep.mubr.f32.mxu0 0.0
    %538 = vmatmul.mubr.f32.gmra.mrb[0].mxu0 %v426
    %v539 = vpop.f32.mrb[0].mxu0
    %v540 = vadd.f32 0.0, %v539
    %v541 = vpop.f32.mrb[0].mxu0
    %542 = vmatprep.mubr.f32.mxu0 0.0
    %543 = vmatmul.mubr.f32.gmra.mrb[0].mxu0 %v429
    %v544 = vpop.f32.mrb[0].mxu0
    %v545 = vadd.f32 0.0, %v544
    %v546 = vpop.f32.mrb[0].mxu0
    %547 = vmatprep.mubr.f32.mxu0 0.0
    %548 = vmatmul.mubr.f32.gmra.mrb[0].mxu0 %v432
    %v549 = vpop.f32.mrb[0].mxu0
    %v550 = vadd.f32 0.0, %v549
    %v551 = vpop.f32.mrb[0].mxu0
    %552 = vmatprep.mubr.f32.mxu0 0.0
    %553 = vmatmul.mubr.f32.gmra.mrb[0].mxu0 %v435
    %v554 = vpop.f32.mrb[0].mxu0
    %v555 = vadd.f32 0.0, %v554
    %v556 = vpop.f32.mrb[0].mxu0
    %557 = vmatprep.mubr.f32.mxu0 0.0
    %558 = vmatmul.mubr.f32.gmra.mrb[0].mxu0 %v438
    %v559 = vpop.f32.mrb[0].mxu0
    %v560 = vadd.f32 0.0, %v559
    %v561 = vpop.f32.mrb[0].mxu0
    %562 = vmatprep.mubr.f32.mxu0 0.0
    %563 = vmatmul.mubr.f32.gmra.mrb[0].mxu0 %v441
    %v564 = vpop.f32.mrb[0].mxu0
    %v565 = vadd.f32 0.0, %v564
    %v566 = vpop.f32.mrb[0].mxu0
    %567 = vmatprep.mubr.f32.mxu0 0.0
    %568 = vmatmul.mubr.f32.gmra.mrb[0].mxu0 %v444
    %v569 = vpop.f32.mrb[0].mxu0
    %v570 = vadd.f32 0.0, %v569
    %v571 = vpop.f32.mrb[0].mxu0
    %572 = vmatprep.mubr.f32.mxu0 0.0
    %573 = vmatmul.mubr.f32.gmra.mrb[0].mxu0 %v447
    %v574 = vpop.f32.mrb[0].mxu0
    %v575 = vadd.f32 0.0, %v574
    %v576 = vpop.f32.mrb[0].mxu0
    %577 = vmatprep.mubr.f32.mxu0 0.0
    %578 = vmatmul.mubr.f32.gmra.mrb[0].mxu0 %v450
    %v579 = vpop.f32.mrb[0].mxu0
    %v580 = vadd.f32 0.0, %v579
    %v581 = vpop.f32.mrb[0].mxu0
    %582 = vmatprep.mubr.f32.mxu0 0.0
    %583 = vmatmul.mubr.f32.gmra.mrb[0].mxu0 %v453
    %v584 = vpop.f32.mrb[0].mxu0
    %v585 = vadd.f32 0.0, %v584
    %v586 = vpop.f32.mrb[0].mxu0
    %587 = vmatprep.mubr.f32.mxu0 0.0
    %588 = vmatmul.mubr.f32.gmra.mrb[0].mxu0 %v456
    %v589 = vpop.f32.mrb[0].mxu0
    %v590 = vadd.f32 0.0, %v589
    %v591 = vpop.f32.mrb[0].mxu0
    %592 = vmatprep.mubr.f32.mxu0 0.0
    %593 = vmatmul.mubr.f32.gmra.mrb[0].mxu0 %v459
    %v594 = vpop.f32.mrb[0].mxu0
    %v595 = vadd.f32 0.0, %v594
    %v596 = vpop.f32.mrb[0].mxu0
    %597 = vmatprep.mubr.f32.mxu0 0.0
    %598 = vmatmul.mubr.f32.gmra.mrb[0].mxu0 %v462
    %v599 = vpop.f32.mrb[0].mxu0
    %v600 = vadd.f32 0.0, %v599
    %v601 = vpop.f32.mrb[0].mxu0
    %602 = vmatprep.mubr.f32.mxu0 0.0
    %603 = vmatmul.mubr.f32.gmra.mrb[0].mxu0 %v465
    %v604 = vpop.f32.mrb[0].mxu0
    %v605 = vadd.f32 0.0, %v604
    %v606 = vpop.f32.mrb[0].mxu0
    %607 = vmatprep.mubr.f32.mxu0 0.0
    %608 = vmatmul.mubr.f32.gmra.mrb[0].mxu0 %v468
    %v609 = vpop.f32.mrb[0].mxu0
    %v610 = vadd.f32 0.0, %v609
    %v611 = vpop.f32.mrb[0].mxu0
    %612 = vmatprep.mubr.f32.mxu0 0.0
    %613 = vmatmul.mubr.f32.gmra.mrb[0].mxu0 %v471
    %v614 = vpop.f32.mrb[0].mxu0
    %v615 = vadd.f32 0.0, %v614
    %v616 = vpop.f32.mrb[0].mxu0
    %617 = vdwg.mxu0
    %618 = vxpose.xlu0.b32.start [1/16] %v540, 128
    %619 = vxpose.xlu0.b32.cont [2/16] %v545, 128
    %620 = vxpose.xlu0.b32.cont [3/16] %v550, 128
    %621 = vxpose.xlu0.b32.cont [4/16] %v555, 128
    %622 = vxpose.xlu0.b32.cont [5/16] %v560, 128
    %623 = vxpose.xlu0.b32.cont [6/16] %v565, 128
    %624 = vxpose.xlu0.b32.cont [7/16] %v570, 128
    %625 = vxpose.xlu0.b32.cont [8/16] %v575, 128
    %626 = vxpose.xlu0.b32.cont [9/16] %v580, 128
    %627 = vxpose.xlu0.b32.cont [10/16] %v585, 128
    %628 = vxpose.xlu0.b32.cont [11/16] %v590, 128
    %629 = vxpose.xlu0.b32.cont [12/16] %v595, 128
    %630 = vxpose.xlu0.b32.cont [13/16] %v600, 128
    %631 = vxpose.xlu0.b32.cont [14/16] %v605, 128
    %632 = vxpose.xlu0.b32.cont [15/16] %v610, 128
    %633 = vxpose.xlu0.b32.end [16/16] %v615, 128
    %v634 = vpop.trf.xlu0
    %v635 = vpop.trf.xlu0
    %v636 = vpop.trf.xlu0
    %v637 = vpop.trf.xlu0
    %v638 = vpop.trf.xlu0
    %v639 = vpop.trf.xlu0
    %v640 = vpop.trf.xlu0
    %v641 = vpop.trf.xlu0
    %v642 = vpop.trf.xlu0
    %v643 = vpop.trf.xlu0
    %v644 = vpop.trf.xlu0
    %v645 = vpop.trf.xlu0
    %v646 = vpop.trf.xlu0
    %v647 = vpop.trf.xlu0
    %v648 = vpop.trf.xlu0
    %v649 = vpop.trf.xlu0
    %650 = vst [vmem:[%s7] sm:$0xff] %v634
    %651 = vst [vmem:[%s7 + $0x8] sm:$0xff] %v635
    // Predicated region
    $region34: #{transform_cov_forward.1} parent=1 // pred_check
      _
    $region35: #{transform_cov_forward.1} parent=1 // pred_check_branch
      %653 = sbr.rel (0) target = $region37
    $region36: #{transform_cov_forward.1} parent=1 // pred_region
      _
    $region37: #{transform_cov_forward.1} parent=1 // pred_fallthru
      _
    // Predicated region
    $region38: #{transform_cov_forward.1} parent=1 // pred_check
      _
    $region39: #{transform_cov_forward.1} parent=1 // pred_check_branch
      %655 = sbr.rel (0) target = $region41
    $region40: #{transform_cov_forward.1} parent=1 // pred_region
      _
    $region41: #{transform_cov_forward.1} parent=1 // pred_fallthru
      _
    %656 = vsyncpa [#allocation3], 1

</llo_original>
